<compile_context>
chip_gen: v6e
topology: v6e:2x2x1
jax: 0.10.0
libtpu: 0.0.40
codegen_flags: <defaults>
</compile_context>

<pallas_src>
import numpy as np
import jax
import jax.numpy as jnp
from jax.experimental import pallas as pl
from jax.experimental.pallas import tpu as pltpu

# ---------------- module constants (from Ankle_2dof.__init__, Left=False) ----------------
MUSCLE_NUM = 4
DOF = 2
EMG_CHANNEL_COUNT = 4          # torch.matmul(EMG, eye(muscle_num, C)) -> assume C == muscle_num
EMG_MAT_LR = 10.0
DYNAMIC_LR = 0.1
K0_SCALE, K1_SCALE = 2000.0, 40000.0
L0_SCALE, L1_SCALE = 0.03, 0.006
I_SCALE, M_SCALE = 0.008, 0.05

LANES = 128                    # fixed lane tile


def make_params():
    """Deterministic parameter init mirroring the PyTorch __init__ (values / scale / Lr)."""
    # Muscle(K0, K1, L0, L1, M) for [TP, PL, TA, GAS], Left == False branch.
    K0 = jnp.array([2000.0, 2000.0, 2000.0, 2000.0], jnp.float32)
    K1 = jnp.array([40000.0, 40000.0, 40000.0, 40000.0], jnp.float32)
    L0 = jnp.array([0.03, 0.05, 0.098, 0.05], jnp.float32)
    L1 = jnp.array([0.006, 0.006, 0.006, 0.006], jnp.float32)
    M = jnp.array([[-0.02, -0.01],
                   [0.0275, -0.01],
                   [0.0125, 0.04],
                   [0.0025, -0.045]], jnp.float32)
    I = jnp.array([0.004, 0.008], jnp.float32)
    return dict(
        emg_mat=jnp.eye(MUSCLE_NUM, EMG_CHANNEL_COUNT, dtype=jnp.float32) / EMG_MAT_LR,
        K0=K0 / K0_SCALE / DYNAMIC_LR,
        K1=K1 / K1_SCALE / DYNAMIC_LR,
        L0=L0 / L0_SCALE / DYNAMIC_LR,     # stored for parity; cancels in the force law
        L1=L1 / L1_SCALE / DYNAMIC_LR,
        M=M / M_SCALE / DYNAMIC_LR,
        I=I / I_SCALE / DYNAMIC_LR,
    )


def _round_up(x, m):
    return (x + m - 1) // m * m


# ---------------------------------- Pallas kernel ----------------------------------------
def _make_kernel(amat, K0, K1, L1, M, inv_I, dt):
    """Builds a kernel with every parameter (and dt) baked in as compile-time scalars.

    amat: (C, muscle_num) nested list such that Alphas = EMG @ amat.
    K0/K1/L1: length-muscle_num lists, M: (muscle_num, 2) list, inv_I: length-2 list.
    Data layout inside the kernel is [feature, rows, lanes]; features are
    [EMG_0..EMG_{C-1}, theta_x, theta_y, omega_x, omega_y].
    """
    n_ch = len(amat)           # EMG channels (rows of amat)
    n_muscle = len(amat[0])    # muscles (columns of amat)
    dt = float(dt)
    w_scale = (float(inv_I[0]) * dt, float(inv_I[1]) * dt)   # fold dt/I into one constant

    def kernel(x_ref, out_ref):
        # x_ref: (n_ch + 4, rows_blk, 128); out_ref: (4, rows_blk, 128).
        # Every loaded plane is a dense (rows_blk, 128) tile -> full VPU density.
        emg = [x_ref[c] for c in range(n_ch)]
        theta_x = x_ref[n_ch + 0]
        theta_y = x_ref[n_ch + 1]
        omega_x = x_ref[n_ch + 2]
        omega_y = x_ref[n_ch + 3]

        tau_x = None
        tau_y = None
        for m in range(n_muscle):
            # alpha_m = sum_c EMG[c] * amat[c, m]  (skip structural zeros / unit weights)
            alpha = None
            for c in range(n_ch):
                w = float(amat[c][m])
                if w == 0.0:
                    continue
                term = emg[c] if w == 1.0 else w * emg[c]
                alpha = term if alpha is None else alpha + term

            elong = M[m][0] * theta_x + M[m][1] * theta_y       # M_m . theta
            if alpha is None:                                   # zero column -> a_m == 0
                force = K0[m] * (-elong)
            else:
                stiff = K0[m] + K1[m] * alpha                   # K0 + K1*a
                force = stiff * (L1[m] * alpha - elong)

            tx = M[m][0] * force
            ty = M[m][1] * force
            tau_x = tx if tau_x is None else tau_x + tx
            tau_y = ty if tau_y is None else tau_y + ty

        # semi-implicit Euler; (dt / I) precomputed (reciprocal multiply, no divide)
        omega_x_new = omega_x + tau_x * w_scale[0]
        omega_y_new = omega_y + tau_y * w_scale[1]
        theta_x_new = theta_x + omega_x_new * dt
        theta_y_new = theta_y + omega_y_new * dt

        # four dense, unmasked (rows_blk, 128) stores
        out_ref[0] = theta_x_new
        out_ref[1] = theta_y_new
        out_ref[2] = omega_x_new
        out_ref[3] = omega_y_new

    return kernel


def ankle_2dof_forward(SS, EMG, dt, params, *, target_rows=256):
    """SS: (B, 4) [theta_x, theta_y, omega_x, omega_y];  EMG: (B, C);  returns (B, 4).

    target_rows: max sublane-rows per grid step; rows_blk*128 batch elements are
    processed per step (256 rows ~= 32K batch elems ~ 1.5 MB moved per step).
    """
    B = SS.shape[0]
    C = EMG.shape[1]
    assert SS.shape[1] == 2 * DOF

    # Bake the tiny constant parameters into the kernel (compile-time scalars):
    # same un-scale pattern as `EMG_to_Activation_Mat * EMG_mat_Lr` etc.
    amat_eff = np.asarray(params["emg_mat"] * EMG_MAT_LR, dtype=np.float32)          # (C, 4)
    K0 = np.asarray(params["K0"] * K0_SCALE * DYNAMIC_LR, dtype=np.float32)
    K1 = np.asarray(params["K1"] * K1_SCALE * DYNAMIC_LR, dtype=np.float32)
    L1 = np.asarray(params["L1"] * L1_SCALE * DYNAMIC_LR, dtype=np.float32)
    M = np.asarray(params["M"] * M_SCALE * DYNAMIC_LR, dtype=np.float32)              # (4, 2)
    inv_I = np.asarray(1.0 / (params["I"] * I_SCALE * DYNAMIC_LR), dtype=np.float32)  # (2,)

    kernel = _make_kernel(amat_eff.tolist(), K0.tolist(), K1.tolist(),
                          L1.tolist(), M.tolist(), inv_I.tolist(), float(dt))

    # --- batch -> (rows, 128 lanes) dense tiling, adaptive block size ---------------------
    rows_needed = _round_up(max(pl.cdiv(B, LANES), 1), 8)
    if rows_needed > 8:
        # split into >= 2 grid steps when there is enough work (v7x: 2 TensorCores),
        # capped at target_rows rows per step (VMEM: block ~ 12*rows_blk*128*4 B,
        # double-buffered well under every generation's scoped VMEM at 256 rows).
        rows_blk = min(int(target_rows), _round_up(pl.cdiv(rows_needed, 2), 8))
    else:
        rows_blk = 8
    rows_total = _round_up(rows_needed, rows_blk)
    Bp = rows_total * LANES
    grid = (rows_total // rows_blk,)

    F_in = C + 2 * DOF   # 8 when C == 4 -> one 8-feature stream, sublanes fully used

    # single fused concat + pad + transpose + reshape into [feature, rows, lanes]
    x = jnp.concatenate([EMG.astype(jnp.float32), SS.astype(jnp.float32)], axis=1)     # (B, 8)
    x = jnp.pad(x, ((0, Bp - B), (0, 0)))                                              # (Bp, 8)
    x = x.T.reshape(F_in, rows_total, LANES)                                           # (8, R, 128)

    out = pl.pallas_call(
        kernel,
        out_shape=jax.ShapeDtypeStruct((2 * DOF, rows_total, LANES), jnp.float32),
        grid=grid,
        in_specs=[pl.BlockSpec((F_in, rows_blk, LANES), lambda i: (0, i, 0))],
        out_specs=pl.BlockSpec((2 * DOF, rows_blk, LANES), lambda i: (0, i, 0)),
        compiler_params=pltpu.CompilerParams(dimension_semantics=("parallel",)),
    )(x)

    # single un-pad + transpose back to the PyTorch (B, 4) layout
    return out.reshape(2 * DOF, Bp).T[:B]


# ------------------------------- pure-JAX reference --------------------------------------
def ankle_2dof_reference(SS, EMG, dt, params):
    amat_eff = params["emg_mat"] * EMG_MAT_LR
    alphas = EMG @ amat_eff
    K0 = params["K0"] * K0_SCALE * DYNAMIC_LR
    K1 = params["K1"] * K1_SCALE * DYNAMIC_LR
    L1 = params["L1"] * L1_SCALE * DYNAMIC_LR
    M = params["M"] * M_SCALE * DYNAMIC_LR
    I = params["I"] * I_SCALE * DYNAMIC_LR
    theta, omega = SS[:, :DOF], SS[:, DOF:]
    stiff = K0[None, :] + K1[None, :] * alphas
    force = stiff * (L1[None, :] * alphas - theta @ M.T)
    acc = (force @ M) / I[None, :]
    omega_new = omega + acc * dt
    theta_new = theta + omega_new * dt
    return jnp.concatenate([theta_new, omega_new], axis=1)


if __name__ == "__main__":
    key = jax.random.PRNGKey(0)
    k_ss, k_emg = jax.random.split(key)

    B = 16
    SS = jax.random.normal(k_ss, (B, 2 * DOF), dtype=jnp.float32) * 0.1     # small angles/velocities
    EMG = jax.nn.sigmoid(jax.random.normal(k_emg, (B, EMG_CHANNEL_COUNT), dtype=jnp.float32))
    dt = 0.01

    params = make_params()

    out = ankle_2dof_forward(SS, EMG, dt, params)
    out = jax.block_until_ready(out)

    ref = ankle_2dof_reference(SS, EMG, dt, params)
    assert out.shape == (B, 2 * DOF) and out.dtype == jnp.float32
    assert jnp.allclose(out, ref, rtol=1e-3, atol=1e-5), "Pallas output mismatch vs reference"

    print("KERNEL_OK")
</pallas_src>

<mosaic_0001>
module attributes {stable_mosaic.version = 11 : i64} {
  func.func @kernel(%arg0: i32, %arg1: memref<8x8x128xf32, #tpu.memory_space<vmem>>, %arg2: memref<4x8x128xf32, #tpu.memory_space<vmem>>) attributes {dimension_semantics = [#tpu.dimension_semantics<parallel>], iteration_bounds = array<i64: 1>, scalar_prefetch = 0 : i64, scratch_operands = 0 : i64, tpu.core_type = #tpu.core_type<tc>, window_params = [{transform_indices = @transform_0, window_bounds = array<i64: 8, 8, 128>}, {transform_indices = @transform_1, window_bounds = array<i64: 4, 8, 128>}]} {
    %c0 = arith.constant 0 : index
    %c0_0 = arith.constant 0 : index
    %c0_1 = arith.constant 0 : index
    %0 = vector.load %arg1[%c0, %c0_0, %c0_1] : memref<8x8x128xf32, #tpu.memory_space<vmem>>, vector<1x8x128xf32>
    %1 = vector.shape_cast %0 : vector<1x8x128xf32> to vector<8x128xf32>
    %c1 = arith.constant 1 : index
    %c0_2 = arith.constant 0 : index
    %c0_3 = arith.constant 0 : index
    %2 = vector.load %arg1[%c1, %c0_2, %c0_3] : memref<8x8x128xf32, #tpu.memory_space<vmem>>, vector<1x8x128xf32>
    %3 = vector.shape_cast %2 : vector<1x8x128xf32> to vector<8x128xf32>
    %c2 = arith.constant 2 : index
    %c0_4 = arith.constant 0 : index
    %c0_5 = arith.constant 0 : index
    %4 = vector.load %arg1[%c2, %c0_4, %c0_5] : memref<8x8x128xf32, #tpu.memory_space<vmem>>, vector<1x8x128xf32>
    %5 = vector.shape_cast %4 : vector<1x8x128xf32> to vector<8x128xf32>
    %c3 = arith.constant 3 : index
    %c0_6 = arith.constant 0 : index
    %c0_7 = arith.constant 0 : index
    %6 = vector.load %arg1[%c3, %c0_6, %c0_7] : memref<8x8x128xf32, #tpu.memory_space<vmem>>, vector<1x8x128xf32>
    %7 = vector.shape_cast %6 : vector<1x8x128xf32> to vector<8x128xf32>
    %c4 = arith.constant 4 : index
    %c0_8 = arith.constant 0 : index
    %c0_9 = arith.constant 0 : index
    %8 = vector.load %arg1[%c4, %c0_8, %c0_9] : memref<8x8x128xf32, #tpu.memory_space<vmem>>, vector<1x8x128xf32>
    %9 = vector.shape_cast %8 : vector<1x8x128xf32> to vector<8x128xf32>
    %c5 = arith.constant 5 : index
    %c0_10 = arith.constant 0 : index
    %c0_11 = arith.constant 0 : index
    %10 = vector.load %arg1[%c5, %c0_10, %c0_11] : memref<8x8x128xf32, #tpu.memory_space<vmem>>, vector<1x8x128xf32>
    %11 = vector.shape_cast %10 : vector<1x8x128xf32> to vector<8x128xf32>
    %c6 = arith.constant 6 : index
    %c0_12 = arith.constant 0 : index
    %c0_13 = arith.constant 0 : index
    %12 = vector.load %arg1[%c6, %c0_12, %c0_13] : memref<8x8x128xf32, #tpu.memory_space<vmem>>, vector<1x8x128xf32>
    %13 = vector.shape_cast %12 : vector<1x8x128xf32> to vector<8x128xf32>
    %c7 = arith.constant 7 : index
    %c0_14 = arith.constant 0 : index
    %c0_15 = arith.constant 0 : index
    %14 = vector.load %arg1[%c7, %c0_14, %c0_15] : memref<8x8x128xf32, #tpu.memory_space<vmem>>, vector<1x8x128xf32>
    %15 = vector.shape_cast %14 : vector<1x8x128xf32> to vector<8x128xf32>
    %cst = arith.constant -2.000000e-02 : f32
    %16 = vector.broadcast %cst : f32 to vector<8x128xf32>
    %17 = arith.mulf %16, %9 : vector<8x128xf32>
    %cst_16 = arith.constant -0.00999999977 : f32
    %18 = vector.broadcast %cst_16 : f32 to vector<8x128xf32>
    %19 = arith.mulf %18, %11 : vector<8x128xf32>
    %20 = arith.addf %17, %19 : vector<8x128xf32>
    %cst_17 = arith.constant 4.000000e+04 : f32
    %21 = vector.broadcast %cst_17 : f32 to vector<8x128xf32>
    %22 = arith.mulf %21, %1 : vector<8x128xf32>
    %cst_18 = arith.constant 2.000000e+03 : f32
    %23 = vector.broadcast %cst_18 : f32 to vector<8x128xf32>
    %24 = arith.addf %23, %22 : vector<8x128xf32>
    %cst_19 = arith.constant 0.00600000052 : f32
    %25 = vector.broadcast %cst_19 : f32 to vector<8x128xf32>
    %26 = arith.mulf %25, %1 : vector<8x128xf32>
    %27 = arith.subf %26, %20 : vector<8x128xf32>
    %28 = arith.mulf %24, %27 : vector<8x128xf32>
    %cst_20 = arith.constant -2.000000e-02 : f32
    %29 = vector.broadcast %cst_20 : f32 to vector<8x128xf32>
    %30 = arith.mulf %29, %28 : vector<8x128xf32>
    %cst_21 = arith.constant -0.00999999977 : f32
    %31 = vector.broadcast %cst_21 : f32 to vector<8x128xf32>
    %32 = arith.mulf %31, %28 : vector<8x128xf32>
    %cst_22 = arith.constant 0.0275000017 : f32
    %33 = vector.broadcast %cst_22 : f32 to vector<8x128xf32>
    %34 = arith.mulf %33, %9 : vector<8x128xf32>
    %cst_23 = arith.constant -0.00999999977 : f32
    %35 = vector.broadcast %cst_23 : f32 to vector<8x128xf32>
    %36 = arith.mulf %35, %11 : vector<8x128xf32>
    %37 = arith.addf %34, %36 : vector<8x128xf32>
    %cst_24 = arith.constant 4.000000e+04 : f32
    %38 = vector.broadcast %cst_24 : f32 to vector<8x128xf32>
    %39 = arith.mulf %38, %3 : vector<8x128xf32>
    %cst_25 = arith.constant 2.000000e+03 : f32
    %40 = vector.broadcast %cst_25 : f32 to vector<8x128xf32>
    %41 = arith.addf %40, %39 : vector<8x128xf32>
    %cst_26 = arith.constant 0.00600000052 : f32
    %42 = vector.broadcast %cst_26 : f32 to vector<8x128xf32>
    %43 = arith.mulf %42, %3 : vector<8x128xf32>
    %44 = arith.subf %43, %37 : vector<8x128xf32>
    %45 = arith.mulf %41, %44 : vector<8x128xf32>
    %cst_27 = arith.constant 0.0275000017 : f32
    %46 = vector.broadcast %cst_27 : f32 to vector<8x128xf32>
    %47 = arith.mulf %46, %45 : vector<8x128xf32>
    %cst_28 = arith.constant -0.00999999977 : f32
    %48 = vector.broadcast %cst_28 : f32 to vector<8x128xf32>
    %49 = arith.mulf %48, %45 : vector<8x128xf32>
    %50 = arith.addf %30, %47 : vector<8x128xf32>
    %51 = arith.addf %32, %49 : vector<8x128xf32>
    %cst_29 = arith.constant 1.250000e-02 : f32
    %52 = vector.broadcast %cst_29 : f32 to vector<8x128xf32>
    %53 = arith.mulf %52, %9 : vector<8x128xf32>
    %cst_30 = arith.constant 4.000000e-02 : f32
    %54 = vector.broadcast %cst_30 : f32 to vector<8x128xf32>
    %55 = arith.mulf %54, %11 : vector<8x128xf32>
    %56 = arith.addf %53, %55 : vector<8x128xf32>
    %cst_31 = arith.constant 4.000000e+04 : f32
    %57 = vector.broadcast %cst_31 : f32 to vector<8x128xf32>
    %58 = arith.mulf %57, %5 : vector<8x128xf32>
    %cst_32 = arith.constant 2.000000e+03 : f32
    %59 = vector.broadcast %cst_32 : f32 to vector<8x128xf32>
    %60 = arith.addf %59, %58 : vector<8x128xf32>
    %cst_33 = arith.constant 0.00600000052 : f32
    %61 = vector.broadcast %cst_33 : f32 to vector<8x128xf32>
    %62 = arith.mulf %61, %5 : vector<8x128xf32>
    %63 = arith.subf %62, %56 : vector<8x128xf32>
    %64 = arith.mulf %60, %63 : vector<8x128xf32>
    %cst_34 = arith.constant 1.250000e-02 : f32
    %65 = vector.broadcast %cst_34 : f32 to vector<8x128xf32>
    %66 = arith.mulf %65, %64 : vector<8x128xf32>
    %cst_35 = arith.constant 4.000000e-02 : f32
    %67 = vector.broadcast %cst_35 : f32 to vector<8x128xf32>
    %68 = arith.mulf %67, %64 : vector<8x128xf32>
    %69 = arith.addf %50, %66 : vector<8x128xf32>
    %70 = arith.addf %51, %68 : vector<8x128xf32>
    %cst_36 = arith.constant 2.500000e-03 : f32
    %71 = vector.broadcast %cst_36 : f32 to vector<8x128xf32>
    %72 = arith.mulf %71, %9 : vector<8x128xf32>
    %cst_37 = arith.constant -4.500000e-02 : f32
    %73 = vector.broadcast %cst_37 : f32 to vector<8x128xf32>
    %74 = arith.mulf %73, %11 : vector<8x128xf32>
    %75 = arith.addf %72, %74 : vector<8x128xf32>
    %cst_38 = arith.constant 4.000000e+04 : f32
    %76 = vector.broadcast %cst_38 : f32 to vector<8x128xf32>
    %77 = arith.mulf %76, %7 : vector<8x128xf32>
    %cst_39 = arith.constant 2.000000e+03 : f32
    %78 = vector.broadcast %cst_39 : f32 to vector<8x128xf32>
    %79 = arith.addf %78, %77 : vector<8x128xf32>
    %cst_40 = arith.constant 0.00600000052 : f32
    %80 = vector.broadcast %cst_40 : f32 to vector<8x128xf32>
    %81 = arith.mulf %80, %7 : vector<8x128xf32>
    %82 = arith.subf %81, %75 : vector<8x128xf32>
    %83 = arith.mulf %79, %82 : vector<8x128xf32>
    %cst_41 = arith.constant 2.500000e-03 : f32
    %84 = vector.broadcast %cst_41 : f32 to vector<8x128xf32>
    %85 = arith.mulf %84, %83 : vector<8x128xf32>
    %cst_42 = arith.constant -4.500000e-02 : f32
    %86 = vector.broadcast %cst_42 : f32 to vector<8x128xf32>
    %87 = arith.mulf %86, %83 : vector<8x128xf32>
    %88 = arith.addf %69, %85 : vector<8x128xf32>
    %89 = arith.addf %70, %87 : vector<8x128xf32>
    %cst_43 = arith.constant 2.49999976 : f32
    %90 = vector.broadcast %cst_43 : f32 to vector<8x128xf32>
    %91 = arith.mulf %88, %90 : vector<8x128xf32>
    %92 = arith.addf %13, %91 : vector<8x128xf32>
    %cst_44 = arith.constant 1.24999988 : f32
    %93 = vector.broadcast %cst_44 : f32 to vector<8x128xf32>
    %94 = arith.mulf %89, %93 : vector<8x128xf32>
    %95 = arith.addf %15, %94 : vector<8x128xf32>
    %cst_45 = arith.constant 0.00999999977 : f32
    %96 = vector.broadcast %cst_45 : f32 to vector<8x128xf32>
    %97 = arith.mulf %92, %96 : vector<8x128xf32>
    %98 = arith.addf %9, %97 : vector<8x128xf32>
    %cst_46 = arith.constant 0.00999999977 : f32
    %99 = vector.broadcast %cst_46 : f32 to vector<8x128xf32>
    %100 = arith.mulf %95, %99 : vector<8x128xf32>
    %101 = arith.addf %11, %100 : vector<8x128xf32>
    %c0_47 = arith.constant 0 : index
    %c0_48 = arith.constant 0 : index
    %c0_49 = arith.constant 0 : index
    %102 = vector.load %arg2[%c0_47, %c0_48, %c0_49] : memref<4x8x128xf32, #tpu.memory_space<vmem>>, vector<1x8x128xf32>
    %103 = vector.shape_cast %102 : vector<1x8x128xf32> to vector<8x128xf32>
    %104 = vector.shape_cast %98 : vector<8x128xf32> to vector<1x8x128xf32>
    tpu.vector_store %arg2[%c0_47, %c0_48, %c0_49], %104 {strides = array<i32>} : memref<4x8x128xf32, #tpu.memory_space<vmem>>, vector<1x8x128xf32>,
    %c1_50 = arith.constant 1 : index
    %c0_51 = arith.constant 0 : index
    %c0_52 = arith.constant 0 : index
    %105 = vector.load %arg2[%c1_50, %c0_51, %c0_52] : memref<4x8x128xf32, #tpu.memory_space<vmem>>, vector<1x8x128xf32>
    %106 = vector.shape_cast %105 : vector<1x8x128xf32> to vector<8x128xf32>
    %107 = vector.shape_cast %101 : vector<8x128xf32> to vector<1x8x128xf32>
    tpu.vector_store %arg2[%c1_50, %c0_51, %c0_52], %107 {strides = array<i32>} : memref<4x8x128xf32, #tpu.memory_space<vmem>>, vector<1x8x128xf32>,
    %c2_53 = arith.constant 2 : index
    %c0_54 = arith.constant 0 : index
    %c0_55 = arith.constant 0 : index
    %108 = vector.load %arg2[%c2_53, %c0_54, %c0_55] : memref<4x8x128xf32, #tpu.memory_space<vmem>>, vector<1x8x128xf32>
    %109 = vector.shape_cast %108 : vector<1x8x128xf32> to vector<8x128xf32>
    %110 = vector.shape_cast %92 : vector<8x128xf32> to vector<1x8x128xf32>
    tpu.vector_store %arg2[%c2_53, %c0_54, %c0_55], %110 {strides = array<i32>} : memref<4x8x128xf32, #tpu.memory_space<vmem>>, vector<1x8x128xf32>,
    %c3_56 = arith.constant 3 : index
    %c0_57 = arith.constant 0 : index
    %c0_58 = arith.constant 0 : index
    %111 = vector.load %arg2[%c3_56, %c0_57, %c0_58] : memref<4x8x128xf32, #tpu.memory_space<vmem>>, vector<1x8x128xf32>
    %112 = vector.shape_cast %111 : vector<1x8x128xf32> to vector<8x128xf32>
    %113 = vector.shape_cast %95 : vector<8x128xf32> to vector<1x8x128xf32>
    tpu.vector_store %arg2[%c3_56, %c0_57, %c0_58], %113 {strides = array<i32>} : memref<4x8x128xf32, #tpu.memory_space<vmem>>, vector<1x8x128xf32>,
    return
  }
  func.func @transform_0(%arg0: i32) -> (i32, i32, i32) {
    %c0_i32 = arith.constant 0 : i32
    %c0_i32_0 = arith.constant 0 : i32
    %c0_i32_1 = arith.constant 0 : i32
    return %c0_i32, %arg0, %c0_i32_0 : i32, i32, i32
  }
  func.func @transform_1(%arg0: i32) -> (i32, i32, i32) {
    %c0_i32 = arith.constant 0 : i32
    %c0_i32_0 = arith.constant 0 : i32
    %c0_i32_1 = arith.constant 0 : i32
    return %c0_i32, %arg0, %c0_i32_0 : i32, i32, i32
  }
}

</mosaic_0001>

<llo_original>
// kernel: tpu_custom_call.1
$region0: #{tpu_custom_call.1}
  #allocation0 [shape = 'u32[]', space=smem, size = 0x4, offset = 0x4, fixed_abs, tag = 'smem constant byte address 0x4 - core index']
  #allocation1 [shape = 'u32[144,128]{1,0:T(1,128)}', space=vmem, size = 0x12000, scoped, tag = 'internal scratch']
  %s0 = inlined_call_operand.hbm [shape: f32[8,8,128], index: 0, kind: input, shape index: {}]
  %s1 = inlined_call_operand.hbm [shape: f32[4,8,128], index: 1, kind: output, shape index: {}]
  %s2 = sld [smem:[#allocation0]]
  $region18: #{tpu_custom_call.1} parent=0
    _
  %s4 = ssub.s32 1, %s2
  %s5 = scalar_select 0, %s4, %s2
  $region1: #{tpu_custom_call.1} parent=0
    #allocation2 [shape = 'u8[32768]{0}', space=vmem, size = 0x8000, scoped, tag = 'input window, operand 0, single buffered']
    #allocation3 [shape = 's32[1]{0}', space=sflag, size = 0x4, scoped, tag = 'scoped memory for tpu_custom_call.1']
    #allocation4 [shape = 's32[1]{0}', space=sflag, size = 0x4, scoped, tag = 'scoped memory for tpu_custom_call.1']
    #allocation5 [shape = 'u8[16384]{0}', space=vmem, size = 0x4000, scoped, tag = 'output window, operand 0, single buffered']
    %6 = vsyncpa [#allocation3], 0
    %7 = vsyncpa [#allocation4], 0
    // Predicated region
    $region2: #{tpu_custom_call.1} parent=1 // pred_check
      _
    $region3: #{tpu_custom_call.1} parent=1 // pred_check_branch
      %9 = sbr.rel (0) target = $region5
    $region4: #{tpu_custom_call.1} parent=1 // pred_region
      %s11 = ssub.s32 1024, 1024
      %12 = vsyncadd [#allocation3], %s11
      %s13 = sshll.u32 [#allocation2], 4
      %s14 = int_to_ptr.vmem [resolvable:$true] %s13
      %19 = dma.hbm_to_vmem [thread:$0]  %s0, 1024, %s14, [#allocation3], 128, 128, 8
    $region5: #{tpu_custom_call.1} parent=1 // pred_fallthru
      _
    // Predicated region
    $region6: #{tpu_custom_call.1} parent=1 // pred_check
      _
    $region7: #{tpu_custom_call.1} parent=1 // pred_check_branch
      %21 = sbr.rel (0) target = $region9
    $region8: #{tpu_custom_call.1} parent=1 // pred_region
      %22 = dma.done [#allocation3], 1024
    $region9: #{tpu_custom_call.1} parent=1 // pred_fallthru
      _
    %v23 = vld [vmem:[#allocation2] sm:$0xff]
    %s24 = scalar_lea.vmem [#allocation2], 8
    %v25 = vld [vmem:[%s24] sm:$0xff]
    %s26 = scalar_lea.vmem [#allocation2], 16
    %v27 = vld [vmem:[%s26] sm:$0xff]
    %s28 = scalar_lea.vmem [#allocation2], 24
    %v29 = vld [vmem:[%s28] sm:$0xff]
    %s30 = scalar_lea.vmem [#allocation2], 32
    %v31 = vld [vmem:[%s30] sm:$0xff]
    %s32 = scalar_lea.vmem [#allocation2], 40
    %v33 = vld [vmem:[%s32] sm:$0xff]
    %s34 = scalar_lea.vmem [#allocation2], 48
    %v35 = vld [vmem:[%s34] sm:$0xff]
    %s36 = scalar_lea.vmem [#allocation2], 56
    %v37 = vld [vmem:[%s36] sm:$0xff]
    %v38 = vmul.f32 %v31, -0.02
    %v39 = vmul.f32 %v33, -0.01
    %v40 = vadd.f32 %v38, %v39
    %v41 = vmul.f32 %v23, 40000.0
    %v42 = vadd.f32 %v41, 2000.0
    %v43 = vmul.f32 %v23, 0.0060000005
    %v44 = vsub.f32 %v43, %v40
    %v45 = vmul.f32 %v42, %v44
    %v46 = vmul.f32 %v45, -0.02
    %v47 = vmul.f32 %v45, -0.01
    %v48 = vmul.f32 %v31, 0.027500002
    %v49 = vadd.f32 %v48, %v39
    %v50 = vmul.f32 %v25, 40000.0
    %v51 = vadd.f32 %v50, 2000.0
    %v52 = vmul.f32 %v25, 0.0060000005
    %v53 = vsub.f32 %v52, %v49
    %v54 = vmul.f32 %v51, %v53
    %v55 = vmul.f32 %v54, 0.027500002
    %v56 = vmul.f32 %v54, -0.01
    %v57 = vadd.f32 %v46, %v55
    %v58 = vadd.f32 %v47, %v56
    %v59 = vmul.f32 %v31, 0.0125
    %v60 = vmul.f32 %v33, 0.04
    %v61 = vadd.f32 %v59, %v60
    %v62 = vmul.f32 %v27, 40000.0
    %v63 = vadd.f32 %v62, 2000.0
    %v64 = vmul.f32 %v27, 0.0060000005
    %v65 = vsub.f32 %v64, %v61
    %v66 = vmul.f32 %v63, %v65
    %v67 = vmul.f32 %v66, 0.0125
    %v68 = vmul.f32 %v66, 0.04
    %v69 = vadd.f32 %v57, %v67
    %v70 = vadd.f32 %v58, %v68
    %v71 = vmul.f32 %v31, 0.0025
    %v72 = vmul.f32 %v33, -0.045
    %v73 = vadd.f32 %v71, %v72
    %v74 = vmul.f32 %v29, 40000.0
    %v75 = vadd.f32 %v74, 2000.0
    %v76 = vmul.f32 %v29, 0.0060000005
    %v77 = vsub.f32 %v76, %v73
    %v78 = vmul.f32 %v75, %v77
    %v79 = vmul.f32 %v78, 0.0025
    %v80 = vmul.f32 %v78, -0.045
    %v81 = vadd.f32 %v69, %v79
    %v82 = vadd.f32 %v70, %v80
    %v83 = vmul.f32 %v81, 2.4999998
    %v84 = vadd.f32 %v35, %v83
    %v85 = vmul.f32 %v82, 1.2499999
    %v86 = vadd.f32 %v37, %v85
    %v87 = vmul.f32 %v84, 0.01
    %v88 = vadd.f32 %v31, %v87
    %v89 = vmul.f32 %v86, 0.01
    %v90 = vadd.f32 %v33, %v89
    %91 = vst [vmem:[#allocation5] sm:$0xff] %v88
    %s92 = scalar_lea.vmem [#allocation5], 8
    %93 = vst [vmem:[%s92] sm:$0xff] %v90
    %s94 = scalar_lea.vmem [#allocation5], 16
    %95 = vst [vmem:[%s94] sm:$0xff] %v84
    %s96 = scalar_lea.vmem [#allocation5], 24
    %97 = vst [vmem:[%s96] sm:$0xff] %v86
    // Predicated region
    $region10: #{tpu_custom_call.1} parent=1 // pred_check
      _
    $region11: #{tpu_custom_call.1} parent=1 // pred_check_branch
      %99 = sbr.rel (0) target = $region13
    $region12: #{tpu_custom_call.1} parent=1 // pred_region
      %s101 = ssub.s32 512, 512
      %102 = vsyncadd [#allocation4], %s101
      %s103 = sshll.u32 [#allocation5], 4
      %s104 = int_to_ptr.vmem [resolvable:$true] %s103
      %109 = dma.vmem_to_hbm [thread:$0]  %s104, 512, %s1, [#allocation4], 128, 128, 8
    $region13: #{tpu_custom_call.1} parent=1 // pred_fallthru
      _
    // Predicated region
    $region14: #{tpu_custom_call.1} parent=1 // pred_check
      _
    $region15: #{tpu_custom_call.1} parent=1 // pred_check_branch
      %111 = sbr.rel (0) target = $region17
    $region16: #{tpu_custom_call.1} parent=1 // pred_region
      %112 = dma.done [#allocation4], 512
    $region17: #{tpu_custom_call.1} parent=1 // pred_fallthru
      _
    %113 = vsyncpa [#allocation3], 1
    %114 = vsyncpa [#allocation4], 1

</llo_original>
